<compile_context>
chip_gen: v5e
topology: v5e:2x2
jax: 0.10.0
libtpu: 0.0.40
codegen_flags: <defaults>
</compile_context>

<pallas_src>
import functools

import jax
import jax.numpy as jnp
import numpy as np
from jax import lax
from jax.experimental import pallas as pl
from jax.experimental.pallas import tpu as pltpu

K = 3               # conv kernel size
LEAKY_SLOPE = 0.01  # nn.LeakyReLU default
EPS = 1e-5          # nn.InstanceNorm2d default


def _residual_block_kernel(x_ref, mask_ref, w1_ref, b1_ref, w2_ref, b2_ref,
                           o_ref, tap_ref, *, W):
    # x_ref:    (ROWS, S)       ROWS = batch_block*C rows on sublanes, S=H*W on lanes
    # mask_ref: (9, 1, S)       per-tap zero-padding boundary masks
    # w*_ref:   (ROWS, 9*ROWS)  per-tap block-diagonal packed conv weights
    # b*_ref:   (ROWS, 1)       biases (broadcast over lanes)
    # o_ref:    (ROWS, S)
    # tap_ref:  (9*ROWS, S)     f32 VMEM scratch holding the stacked tap slabs
    ROWS, S = x_ref.shape
    inv_s = 1.0 / float(S)

    # Hoist loop-invariant loads once per grid step.
    x = x_ref[...].astype(jnp.float32)        # (ROWS, S)
    masks = mask_ref[...]                     # (9, 1, S)
    w1 = w1_ref[...]
    b1 = b1_ref[...]
    w2 = w2_ref[...]
    b2 = b2_ref[...]

    taps = [(dy, dx) for dy in (-1, 0, 1) for dx in (-1, 0, 1)]

    def conv3x3(inp, w_big, bias):
        # Build the stacked (9*ROWS, S) tap slab: for tap t,
        #   tap[:, p] == inp[:, p + dy*W + dx]  (zero outside the image),
        # then contract all taps/channels with a single MXU dot.
        for t, (dy, dx) in enumerate(taps):
            if dy == 0 and dx == 0:
                tap = inp                                     # centre tap
            else:
                sh = (-(dy * W + dx)) % S                     # static shift
                tap = pltpu.roll(inp, shift=sh, axis=1) * masks[t]
            tap_ref[t * ROWS:(t + 1) * ROWS, :] = tap
        return jnp.dot(w_big, tap_ref[...],
                       preferred_element_type=jnp.float32) + bias

    # conv1 + LeakyReLU (norm1 is Identity)
    h = conv3x3(x, w1, b1)
    h = jnp.where(h >= 0, h, LEAKY_SLOPE * h)

    # conv2 (activation2 is Identity)
    h = conv3x3(h, w2, b2)

    # InstanceNorm2d (two-pass, biased variance, no affine) + residual add.
    mean = jnp.sum(h, axis=1, keepdims=True) * inv_s          # per (n, c) row
    d = h - mean
    var = jnp.sum(d * d, axis=1, keepdims=True) * inv_s
    o_ref[...] = (d * lax.rsqrt(var + EPS) + x).astype(o_ref.dtype)


def _make_tap_masks(H, W):
    """(9, 1, S) float masks: 1 where (h+dy, w+dx) lies inside the image."""
    S = H * W
    idx = np.arange(S)
    h, w = idx // W, idx % W
    masks = []
    for dy in (-1, 0, 1):
        for dx in (-1, 0, 1):
            valid = ((h + dy >= 0) & (h + dy < H) &
                     (w + dx >= 0) & (w + dx < W))
            masks.append(valid.astype(np.float32))
    return jnp.asarray(np.stack(masks)[:, None, :])


def _pack_blockdiag_weight(w, nb):
    """OIHW (C,C,3,3) -> (nb*C, 9*nb*C) per-tap block-diagonal packed weight.

    Column index = t*(nb*C) + b*C + ci; row index = b*C + co; nonzero only
    when the batch blocks match, so one dot does all taps/channels of the
    whole (nb*C, S) slab."""
    C = w.shape[0]
    rows = nb * C
    w_taps = jnp.transpose(w, (2, 3, 0, 1)).reshape(K * K, C, C)       # (t, co, ci)
    eye = jnp.eye(nb, dtype=w.dtype)
    blk = jnp.einsum('ab,toi->taobi', eye, w_taps)                     # (t,b,co,b',ci)
    return (blk.reshape(K * K, rows, rows)
               .transpose(1, 0, 2)
               .reshape(rows, K * K * rows))


def _choose_batch_block(N, C, S, itemsize):
    """Pick batch_block (divisor of N): sublane packing > grid>=2 > block size,
    under a VMEM budget conservative enough for v5e (16 MiB scoped default)."""
    best_d, best_key = 1, None
    for d in range(1, N + 1):
        if N % d:
            continue
        rows = d * C
        block_bytes = rows * S * itemsize
        # double-buffered in + out blocks + f32 tap-stack scratch
        resident = 4 * block_bytes + 9 * rows * S * 4
        key = (
            resident <= (8 << 20),          # fits conservative (v5e-safe) VMEM budget
            rows % 8 == 0,                  # full sublane occupancy (biggest lever)
            (N // d) >= 2,                  # keep >=2 grid steps (v7x megacore, pipeline)
            min(block_bytes, 1 << 20),      # larger blocks amortise per-step overhead
            -d,                             # prefer more grid steps on ties
        )
        if best_key is None or key > best_key:
            best_d, best_key = d, key
    return best_d


def residual_conv_block(x_nchw, w1, b1, w2, b2, *, batch_block=None):
    """x_nchw: (N, C, H, W); w*: (C, C, 3, 3) PyTorch OIHW; b*: (C,)."""
    N, C, H, W = x_nchw.shape
    S = H * W
    itemsize = jnp.dtype(x_nchw.dtype).itemsize
    # NOTE: S % 128 == 0 gives fully lane-dense loads/stores (true for 16x16);
    # other shapes are still correct, just with masked partial stores.

    NB = batch_block if batch_block is not None else _choose_batch_block(
        N, C, S, itemsize)
    assert N % NB == 0
    ROWS = NB * C

    # Glue: pure metadata reshapes + parameter repacking only (no hot-path compute).
    x_rows = x_nchw.reshape(N * C, S)
    masks = _make_tap_masks(H, W)
    w1_big = _pack_blockdiag_weight(w1, NB)
    w2_big = _pack_blockdiag_weight(w2, NB)
    b1_big = jnp.tile(b1, NB).reshape(ROWS, 1)
    b2_big = jnp.tile(b2, NB).reshape(ROWS, 1)

    # VMEM budget: in/out double-buffered + tap scratch + resident params.
    block_bytes = ROWS * S * itemsize
    param_bytes = 4 * (masks.size + w1_big.size + w2_big.size
                       + b1_big.size + b2_big.size)
    resident = 4 * block_bytes + 9 * ROWS * S * 4 + 2 * param_bytes
    vmem_limit = int(min(64 << 20, max(16 << 20, 2 * resident)))

    cost = pl.CostEstimate(
        flops=int(2 * (2 * K * K * C * C * S) * N),       # two 3x3 convs
        transcendentals=int(N * C),                       # one rsqrt per (n, c)
        bytes_accessed=int(2 * N * C * S * itemsize + param_bytes),
    )

    kernel = functools.partial(_residual_block_kernel, W=W)

    out_rows = pl.pallas_call(
        kernel,
        out_shape=jax.ShapeDtypeStruct((N * C, S), x_nchw.dtype),
        grid_spec=pltpu.PrefetchScalarGridSpec(
            num_scalar_prefetch=0,
            grid=(N // NB,),
            in_specs=[
                pl.BlockSpec((ROWS, S), lambda n: (n, 0)),            # x slab
                pl.BlockSpec((K * K, 1, S), lambda n: (0, 0, 0)),     # tap masks
                pl.BlockSpec((ROWS, K * K * ROWS), lambda n: (0, 0)), # w1 packed
                pl.BlockSpec((ROWS, 1), lambda n: (0, 0)),            # b1
                pl.BlockSpec((ROWS, K * K * ROWS), lambda n: (0, 0)), # w2 packed
                pl.BlockSpec((ROWS, 1), lambda n: (0, 0)),            # b2
            ],
            out_specs=pl.BlockSpec((ROWS, S), lambda n: (n, 0)),
            scratch_shapes=[pltpu.VMEM((K * K * ROWS, S), jnp.float32)],
        ),
        compiler_params=pltpu.CompilerParams(
            dimension_semantics=("parallel",),
            vmem_limit_bytes=vmem_limit),
        cost_estimate=cost,
    )(x_rows, masks, w1_big, b1_big, w2_big, b2_big)

    return out_rows.reshape(N, C, H, W)


def _reference(x, w1, b1, w2, b2):
    """Pure-JAX reference reproducing the PyTorch forward (NCHW)."""
    def conv(v, w, b):
        y = lax.conv_general_dilated(
            v, w, window_strides=(1, 1), padding="SAME",
            dimension_numbers=("NCHW", "OIHW", "NCHW"))
        return y + b[None, :, None, None]

    h = conv(x, w1, b1)
    h = jnp.where(h >= 0, h, LEAKY_SLOPE * h)
    h = conv(h, w2, b2)
    mean = jnp.mean(h, axis=(2, 3), keepdims=True)
    var = jnp.mean((h - mean) ** 2, axis=(2, 3), keepdims=True)
    h = (h - mean) / jnp.sqrt(var + EPS)
    return h + x


if __name__ == "__main__":
    N, C, H, W = 2, 4, 16, 16

    key = jax.random.PRNGKey(0)
    kx, kw1, kb1, kw2, kb2 = jax.random.split(key, 5)

    x = jax.random.normal(kx, (N, C, H, W), jnp.float32)

    # deterministic synthetic params, PyTorch-like uniform(-1/sqrt(fan_in), ...)
    fan_in = C * K * K
    bound = 1.0 / (fan_in ** 0.5)
    w1 = jax.random.uniform(kw1, (C, C, K, K), jnp.float32, -bound, bound)
    b1 = jax.random.uniform(kb1, (C,), jnp.float32, -bound, bound)
    w2 = jax.random.uniform(kw2, (C, C, K, K), jnp.float32, -bound, bound)
    b2 = jax.random.uniform(kb2, (C,), jnp.float32, -bound, bound)

    out = residual_conv_block(x, w1, b1, w2, b2)
    jax.block_until_ready(out)

    ref = _reference(x, w1, b1, w2, b2)
    np.testing.assert_allclose(np.asarray(out), np.asarray(ref),
                               atol=1e-4, rtol=1e-4)
    print("KERNEL_OK")
</pallas_src>

<mosaic_0001>
module attributes {stable_mosaic.version = 11 : i64} {
  func.func @_residual_block_kernel(%arg0: i32, %arg1: memref<8x256xf32, #tpu.memory_space<vmem>>, %arg2: memref<9x1x256xf32, #tpu.memory_space<vmem>>, %arg3: memref<8x72xf32, #tpu.memory_space<vmem>>, %arg4: memref<8x1xf32, #tpu.memory_space<vmem>>, %arg5: memref<8x72xf32, #tpu.memory_space<vmem>>, %arg6: memref<8x1xf32, #tpu.memory_space<vmem>>, %arg7: memref<8x256xf32, #tpu.memory_space<vmem>>, %arg8: memref<72x256xf32, #tpu.memory_space<vmem>>) attributes {dimension_semantics = [#tpu.dimension_semantics<parallel>], iteration_bounds = array<i64: 1>, scalar_prefetch = 0 : i64, scratch_operands = 1 : i64, tpu.core_type = #tpu.core_type<tc>, window_params = [{transform_indices = @transform_0, window_bounds = array<i64: 8, 256>}, {pipeline_mode = #tpu.pipeline_mode<synchronous>, transform_indices = @transform_1, window_bounds = array<i64: 9, 1, 256>}, {pipeline_mode = #tpu.pipeline_mode<synchronous>, transform_indices = @transform_2, window_bounds = array<i64: 8, 72>}, {pipeline_mode = #tpu.pipeline_mode<synchronous>, transform_indices = @transform_3, window_bounds = array<i64: 8, 1>}, {pipeline_mode = #tpu.pipeline_mode<synchronous>, transform_indices = @transform_4, window_bounds = array<i64: 8, 72>}, {pipeline_mode = #tpu.pipeline_mode<synchronous>, transform_indices = @transform_5, window_bounds = array<i64: 8, 1>}, {transform_indices = @transform_6, window_bounds = array<i64: 8, 256>}]} {
    %c0 = arith.constant 0 : index
    %c0_0 = arith.constant 0 : index
    %0 = vector.load %arg1[%c0, %c0_0] : memref<8x256xf32, #tpu.memory_space<vmem>>, vector<8x256xf32>
    %c0_1 = arith.constant 0 : index
    %c0_2 = arith.constant 0 : index
    %c0_3 = arith.constant 0 : index
    %1 = vector.load %arg2[%c0_1, %c0_2, %c0_3] : memref<9x1x256xf32, #tpu.memory_space<vmem>>, vector<9x1x256xf32>
    %c0_4 = arith.constant 0 : index
    %c0_5 = arith.constant 0 : index
    %2 = vector.load %arg3[%c0_4, %c0_5] : memref<8x72xf32, #tpu.memory_space<vmem>>, vector<8x72xf32>
    %c0_6 = arith.constant 0 : index
    %c0_7 = arith.constant 0 : index
    %3 = vector.load %arg4[%c0_6, %c0_7] : memref<8x1xf32, #tpu.memory_space<vmem>>, vector<8x1xf32>
    %c0_8 = arith.constant 0 : index
    %c0_9 = arith.constant 0 : index
    %4 = vector.load %arg5[%c0_8, %c0_9] : memref<8x72xf32, #tpu.memory_space<vmem>>, vector<8x72xf32>
    %c0_10 = arith.constant 0 : index
    %c0_11 = arith.constant 0 : index
    %5 = vector.load %arg6[%c0_10, %c0_11] : memref<8x1xf32, #tpu.memory_space<vmem>>, vector<8x1xf32>
    %c17_i32 = arith.constant 17 : i32
    %6 = tpu.dynamic_rotate %0 by %c17_i32 dim 1 : vector<8x256xf32>, i32 -> vector<8x256xf32>
    %7 = vector.extract_strided_slice %1 {offsets = [0, 0, 0], sizes = [1, 1, 256], strides = [1, 1, 1]} : vector<9x1x256xf32> to vector<1x1x256xf32>
    %8 = vector.shape_cast %7 : vector<1x1x256xf32> to vector<1x256xf32>
    %9 = vector.broadcast %8 : vector<1x256xf32> to vector<8x256xf32>
    %10 = arith.mulf %6, %9 : vector<8x256xf32>
    %c0_12 = arith.constant 0 : index
    %c0_13 = arith.constant 0 : index
    %11 = vector.load %arg8[%c0_12, %c0_13] : memref<72x256xf32, #tpu.memory_space<vmem>>, vector<8x256xf32>
    tpu.vector_store %arg8[%c0_12, %c0_13], %10 {strides = array<i32>} : memref<72x256xf32, #tpu.memory_space<vmem>>, vector<8x256xf32>,
    %c16_i32 = arith.constant 16 : i32
    %12 = tpu.dynamic_rotate %0 by %c16_i32 dim 1 : vector<8x256xf32>, i32 -> vector<8x256xf32>
    %13 = vector.extract_strided_slice %1 {offsets = [1, 0, 0], sizes = [1, 1, 256], strides = [1, 1, 1]} : vector<9x1x256xf32> to vector<1x1x256xf32>
    %14 = vector.shape_cast %13 : vector<1x1x256xf32> to vector<1x256xf32>
    %15 = vector.broadcast %14 : vector<1x256xf32> to vector<8x256xf32>
    %16 = arith.mulf %12, %15 : vector<8x256xf32>
    %c8 = arith.constant 8 : index
    %c0_14 = arith.constant 0 : index
    %17 = vector.load %arg8[%c8, %c0_14] : memref<72x256xf32, #tpu.memory_space<vmem>>, vector<8x256xf32>
    tpu.vector_store %arg8[%c8, %c0_14], %16 {strides = array<i32>} : memref<72x256xf32, #tpu.memory_space<vmem>>, vector<8x256xf32>,
    %c15_i32 = arith.constant 15 : i32
    %18 = tpu.dynamic_rotate %0 by %c15_i32 dim 1 : vector<8x256xf32>, i32 -> vector<8x256xf32>
    %19 = vector.extract_strided_slice %1 {offsets = [2, 0, 0], sizes = [1, 1, 256], strides = [1, 1, 1]} : vector<9x1x256xf32> to vector<1x1x256xf32>
    %20 = vector.shape_cast %19 : vector<1x1x256xf32> to vector<1x256xf32>
    %21 = vector.broadcast %20 : vector<1x256xf32> to vector<8x256xf32>
    %22 = arith.mulf %18, %21 : vector<8x256xf32>
    %c16 = arith.constant 16 : index
    %c0_15 = arith.constant 0 : index
    %23 = vector.load %arg8[%c16, %c0_15] : memref<72x256xf32, #tpu.memory_space<vmem>>, vector<8x256xf32>
    tpu.vector_store %arg8[%c16, %c0_15], %22 {strides = array<i32>} : memref<72x256xf32, #tpu.memory_space<vmem>>, vector<8x256xf32>,
    %c1_i32 = arith.constant 1 : i32
    %24 = tpu.dynamic_rotate %0 by %c1_i32 dim 1 : vector<8x256xf32>, i32 -> vector<8x256xf32>
    %25 = vector.extract_strided_slice %1 {offsets = [3, 0, 0], sizes = [1, 1, 256], strides = [1, 1, 1]} : vector<9x1x256xf32> to vector<1x1x256xf32>
    %26 = vector.shape_cast %25 : vector<1x1x256xf32> to vector<1x256xf32>
    %27 = vector.broadcast %26 : vector<1x256xf32> to vector<8x256xf32>
    %28 = arith.mulf %24, %27 : vector<8x256xf32>
    %c24 = arith.constant 24 : index
    %c0_16 = arith.constant 0 : index
    %29 = vector.load %arg8[%c24, %c0_16] : memref<72x256xf32, #tpu.memory_space<vmem>>, vector<8x256xf32>
    tpu.vector_store %arg8[%c24, %c0_16], %28 {strides = array<i32>} : memref<72x256xf32, #tpu.memory_space<vmem>>, vector<8x256xf32>,
    %c32 = arith.constant 32 : index
    %c0_17 = arith.constant 0 : index
    %30 = vector.load %arg8[%c32, %c0_17] : memref<72x256xf32, #tpu.memory_space<vmem>>, vector<8x256xf32>
    tpu.vector_store %arg8[%c32, %c0_17], %0 {strides = array<i32>} : memref<72x256xf32, #tpu.memory_space<vmem>>, vector<8x256xf32>,
    %c255_i32 = arith.constant 255 : i32
    %31 = tpu.dynamic_rotate %0 by %c255_i32 dim 1 : vector<8x256xf32>, i32 -> vector<8x256xf32>
    %32 = vector.extract_strided_slice %1 {offsets = [5, 0, 0], sizes = [1, 1, 256], strides = [1, 1, 1]} : vector<9x1x256xf32> to vector<1x1x256xf32>
    %33 = vector.shape_cast %32 : vector<1x1x256xf32> to vector<1x256xf32>
    %34 = vector.broadcast %33 : vector<1x256xf32> to vector<8x256xf32>
    %35 = arith.mulf %31, %34 : vector<8x256xf32>
    %c40 = arith.constant 40 : index
    %c0_18 = arith.constant 0 : index
    %36 = vector.load %arg8[%c40, %c0_18] : memref<72x256xf32, #tpu.memory_space<vmem>>, vector<8x256xf32>
    tpu.vector_store %arg8[%c40, %c0_18], %35 {strides = array<i32>} : memref<72x256xf32, #tpu.memory_space<vmem>>, vector<8x256xf32>,
    %c241_i32 = arith.constant 241 : i32
    %37 = tpu.dynamic_rotate %0 by %c241_i32 dim 1 : vector<8x256xf32>, i32 -> vector<8x256xf32>
    %38 = vector.extract_strided_slice %1 {offsets = [6, 0, 0], sizes = [1, 1, 256], strides = [1, 1, 1]} : vector<9x1x256xf32> to vector<1x1x256xf32>
    %39 = vector.shape_cast %38 : vector<1x1x256xf32> to vector<1x256xf32>
    %40 = vector.broadcast %39 : vector<1x256xf32> to vector<8x256xf32>
    %41 = arith.mulf %37, %40 : vector<8x256xf32>
    %c48 = arith.constant 48 : index
    %c0_19 = arith.constant 0 : index
    %42 = vector.load %arg8[%c48, %c0_19] : memref<72x256xf32, #tpu.memory_space<vmem>>, vector<8x256xf32>
    tpu.vector_store %arg8[%c48, %c0_19], %41 {strides = array<i32>} : memref<72x256xf32, #tpu.memory_space<vmem>>, vector<8x256xf32>,
    %c240_i32 = arith.constant 240 : i32
    %43 = tpu.dynamic_rotate %0 by %c240_i32 dim 1 : vector<8x256xf32>, i32 -> vector<8x256xf32>
    %44 = vector.extract_strided_slice %1 {offsets = [7, 0, 0], sizes = [1, 1, 256], strides = [1, 1, 1]} : vector<9x1x256xf32> to vector<1x1x256xf32>
    %45 = vector.shape_cast %44 : vector<1x1x256xf32> to vector<1x256xf32>
    %46 = vector.broadcast %45 : vector<1x256xf32> to vector<8x256xf32>
    %47 = arith.mulf %43, %46 : vector<8x256xf32>
    %c56 = arith.constant 56 : index
    %c0_20 = arith.constant 0 : index
    %48 = vector.load %arg8[%c56, %c0_20] : memref<72x256xf32, #tpu.memory_space<vmem>>, vector<8x256xf32>
    tpu.vector_store %arg8[%c56, %c0_20], %47 {strides = array<i32>} : memref<72x256xf32, #tpu.memory_space<vmem>>, vector<8x256xf32>,
    %c239_i32 = arith.constant 239 : i32
    %49 = tpu.dynamic_rotate %0 by %c239_i32 dim 1 : vector<8x256xf32>, i32 -> vector<8x256xf32>
    %50 = vector.extract_strided_slice %1 {offsets = [8, 0, 0], sizes = [1, 1, 256], strides = [1, 1, 1]} : vector<9x1x256xf32> to vector<1x1x256xf32>
    %51 = vector.shape_cast %50 : vector<1x1x256xf32> to vector<1x256xf32>
    %52 = vector.broadcast %51 : vector<1x256xf32> to vector<8x256xf32>
    %53 = arith.mulf %49, %52 : vector<8x256xf32>
    %c64 = arith.constant 64 : index
    %c0_21 = arith.constant 0 : index
    %54 = vector.load %arg8[%c64, %c0_21] : memref<72x256xf32, #tpu.memory_space<vmem>>, vector<8x256xf32>
    tpu.vector_store %arg8[%c64, %c0_21], %53 {strides = array<i32>} : memref<72x256xf32, #tpu.memory_space<vmem>>, vector<8x256xf32>,
    %c0_22 = arith.constant 0 : index
    %c0_23 = arith.constant 0 : index
    %55 = vector.load %arg8[%c0_22, %c0_23] : memref<72x256xf32, #tpu.memory_space<vmem>>, vector<72x256xf32>
    %cst = arith.constant dense<0.000000e+00> : vector<8x256xf32>
    %56 = tpu.matmul %2, %55, %cst {dimension_numbers = #tpu.dot_dimension_numbers<[1], [0], [0], [1], [0, 0, 1, 1], [], []>} : vector<8x72xf32>, vector<72x256xf32>, vector<8x256xf32> -> vector<8x256xf32>
    %57 = vector.broadcast %3 : vector<8x1xf32> to vector<8x256xf32>
    %58 = arith.addf %56, %57 : vector<8x256xf32>
    %cst_24 = arith.constant 0.000000e+00 : f32
    %59 = vector.broadcast %cst_24 : f32 to vector<8x256xf32>
    %60 = arith.cmpf oge, %58, %59 : vector<8x256xf32>
    %cst_25 = arith.constant 0.00999999977 : f32
    %61 = vector.broadcast %cst_25 : f32 to vector<8x256xf32>
    %62 = arith.mulf %61, %58 : vector<8x256xf32>
    %63 = arith.select %60, %58, %62 : vector<8x256xi1>, vector<8x256xf32>
    %c17_i32_26 = arith.constant 17 : i32
    %64 = tpu.dynamic_rotate %63 by %c17_i32_26 dim 1 : vector<8x256xf32>, i32 -> vector<8x256xf32>
    %65 = vector.extract_strided_slice %1 {offsets = [0, 0, 0], sizes = [1, 1, 256], strides = [1, 1, 1]} : vector<9x1x256xf32> to vector<1x1x256xf32>
    %66 = vector.shape_cast %65 : vector<1x1x256xf32> to vector<1x256xf32>
    %67 = vector.broadcast %66 : vector<1x256xf32> to vector<8x256xf32>
    %68 = arith.mulf %64, %67 : vector<8x256xf32>
    %c0_27 = arith.constant 0 : index
    %c0_28 = arith.constant 0 : index
    %69 = vector.load %arg8[%c0_27, %c0_28] : memref<72x256xf32, #tpu.memory_space<vmem>>, vector<8x256xf32>
    tpu.vector_store %arg8[%c0_27, %c0_28], %68 {strides = array<i32>} : memref<72x256xf32, #tpu.memory_space<vmem>>, vector<8x256xf32>,
    %c16_i32_29 = arith.constant 16 : i32
    %70 = tpu.dynamic_rotate %63 by %c16_i32_29 dim 1 : vector<8x256xf32>, i32 -> vector<8x256xf32>
    %71 = vector.extract_strided_slice %1 {offsets = [1, 0, 0], sizes = [1, 1, 256], strides = [1, 1, 1]} : vector<9x1x256xf32> to vector<1x1x256xf32>
    %72 = vector.shape_cast %71 : vector<1x1x256xf32> to vector<1x256xf32>
    %73 = vector.broadcast %72 : vector<1x256xf32> to vector<8x256xf32>
    %74 = arith.mulf %70, %73 : vector<8x256xf32>
    %c8_30 = arith.constant 8 : index
    %c0_31 = arith.constant 0 : index
    %75 = vector.load %arg8[%c8_30, %c0_31] : memref<72x256xf32, #tpu.memory_space<vmem>>, vector<8x256xf32>
    tpu.vector_store %arg8[%c8_30, %c0_31], %74 {strides = array<i32>} : memref<72x256xf32, #tpu.memory_space<vmem>>, vector<8x256xf32>,
    %c15_i32_32 = arith.constant 15 : i32
    %76 = tpu.dynamic_rotate %63 by %c15_i32_32 dim 1 : vector<8x256xf32>, i32 -> vector<8x256xf32>
    %77 = vector.extract_strided_slice %1 {offsets = [2, 0, 0], sizes = [1, 1, 256], strides = [1, 1, 1]} : vector<9x1x256xf32> to vector<1x1x256xf32>
    %78 = vector.shape_cast %77 : vector<1x1x256xf32> to vector<1x256xf32>
    %79 = vector.broadcast %78 : vector<1x256xf32> to vector<8x256xf32>
    %80 = arith.mulf %76, %79 : vector<8x256xf32>
    %c16_33 = arith.constant 16 : index
    %c0_34 = arith.constant 0 : index
    %81 = vector.load %arg8[%c16_33, %c0_34] : memref<72x256xf32, #tpu.memory_space<vmem>>, vector<8x256xf32>
    tpu.vector_store %arg8[%c16_33, %c0_34], %80 {strides = array<i32>} : memref<72x256xf32, #tpu.memory_space<vmem>>, vector<8x256xf32>,
    %c1_i32_35 = arith.constant 1 : i32
    %82 = tpu.dynamic_rotate %63 by %c1_i32_35 dim 1 : vector<8x256xf32>, i32 -> vector<8x256xf32>
    %83 = vector.extract_strided_slice %1 {offsets = [3, 0, 0], sizes = [1, 1, 256], strides = [1, 1, 1]} : vector<9x1x256xf32> to vector<1x1x256xf32>
    %84 = vector.shape_cast %83 : vector<1x1x256xf32> to vector<1x256xf32>
    %85 = vector.broadcast %84 : vector<1x256xf32> to vector<8x256xf32>
    %86 = arith.mulf %82, %85 : vector<8x256xf32>
    %c24_36 = arith.constant 24 : index
    %c0_37 = arith.constant 0 : index
    %87 = vector.load %arg8[%c24_36, %c0_37] : memref<72x256xf32, #tpu.memory_space<vmem>>, vector<8x256xf32>
    tpu.vector_store %arg8[%c24_36, %c0_37], %86 {strides = array<i32>} : memref<72x256xf32, #tpu.memory_space<vmem>>, vector<8x256xf32>,
    %c32_38 = arith.constant 32 : index
    %c0_39 = arith.constant 0 : index
    %88 = vector.load %arg8[%c32_38, %c0_39] : memref<72x256xf32, #tpu.memory_space<vmem>>, vector<8x256xf32>
    tpu.vector_store %arg8[%c32_38, %c0_39], %63 {strides = array<i32>} : memref<72x256xf32, #tpu.memory_space<vmem>>, vector<8x256xf32>,
    %c255_i32_40 = arith.constant 255 : i32
    %89 = tpu.dynamic_rotate %63 by %c255_i32_40 dim 1 : vector<8x256xf32>, i32 -> vector<8x256xf32>
    %90 = vector.extract_strided_slice %1 {offsets = [5, 0, 0], sizes = [1, 1, 256], strides = [1, 1, 1]} : vector<9x1x256xf32> to vector<1x1x256xf32>
    %91 = vector.shape_cast %90 : vector<1x1x256xf32> to vector<1x256xf32>
    %92 = vector.broadcast %91 : vector<1x256xf32> to vector<8x256xf32>
    %93 = arith.mulf %89, %92 : vector<8x256xf32>
    %c40_41 = arith.constant 40 : index
    %c0_42 = arith.constant 0 : index
    %94 = vector.load %arg8[%c40_41, %c0_42] : memref<72x256xf32, #tpu.memory_space<vmem>>, vector<8x256xf32>
    tpu.vector_store %arg8[%c40_41, %c0_42], %93 {strides = array<i32>} : memref<72x256xf32, #tpu.memory_space<vmem>>, vector<8x256xf32>,
    %c241_i32_43 = arith.constant 241 : i32
    %95 = tpu.dynamic_rotate %63 by %c241_i32_43 dim 1 : vector<8x256xf32>, i32 -> vector<8x256xf32>
    %96 = vector.extract_strided_slice %1 {offsets = [6, 0, 0], sizes = [1, 1, 256], strides = [1, 1, 1]} : vector<9x1x256xf32> to vector<1x1x256xf32>
    %97 = vector.shape_cast %96 : vector<1x1x256xf32> to vector<1x256xf32>
    %98 = vector.broadcast %97 : vector<1x256xf32> to vector<8x256xf32>
    %99 = arith.mulf %95, %98 : vector<8x256xf32>
    %c48_44 = arith.constant 48 : index
    %c0_45 = arith.constant 0 : index
    %100 = vector.load %arg8[%c48_44, %c0_45] : memref<72x256xf32, #tpu.memory_space<vmem>>, vector<8x256xf32>
    tpu.vector_store %arg8[%c48_44, %c0_45], %99 {strides = array<i32>} : memref<72x256xf32, #tpu.memory_space<vmem>>, vector<8x256xf32>,
    %c240_i32_46 = arith.constant 240 : i32
    %101 = tpu.dynamic_rotate %63 by %c240_i32_46 dim 1 : vector<8x256xf32>, i32 -> vector<8x256xf32>
    %102 = vector.extract_strided_slice %1 {offsets = [7, 0, 0], sizes = [1, 1, 256], strides = [1, 1, 1]} : vector<9x1x256xf32> to vector<1x1x256xf32>
    %103 = vector.shape_cast %102 : vector<1x1x256xf32> to vector<1x256xf32>
    %104 = vector.broadcast %103 : vector<1x256xf32> to vector<8x256xf32>
    %105 = arith.mulf %101, %104 : vector<8x256xf32>
    %c56_47 = arith.constant 56 : index
    %c0_48 = arith.constant 0 : index
    %106 = vector.load %arg8[%c56_47, %c0_48] : memref<72x256xf32, #tpu.memory_space<vmem>>, vector<8x256xf32>
    tpu.vector_store %arg8[%c56_47, %c0_48], %105 {strides = array<i32>} : memref<72x256xf32, #tpu.memory_space<vmem>>, vector<8x256xf32>,
    %c239_i32_49 = arith.constant 239 : i32
    %107 = tpu.dynamic_rotate %63 by %c239_i32_49 dim 1 : vector<8x256xf32>, i32 -> vector<8x256xf32>
    %108 = vector.extract_strided_slice %1 {offsets = [8, 0, 0], sizes = [1, 1, 256], strides = [1, 1, 1]} : vector<9x1x256xf32> to vector<1x1x256xf32>
    %109 = vector.shape_cast %108 : vector<1x1x256xf32> to vector<1x256xf32>
    %110 = vector.broadcast %109 : vector<1x256xf32> to vector<8x256xf32>
    %111 = arith.mulf %107, %110 : vector<8x256xf32>
    %c64_50 = arith.constant 64 : index
    %c0_51 = arith.constant 0 : index
    %112 = vector.load %arg8[%c64_50, %c0_51] : memref<72x256xf32, #tpu.memory_space<vmem>>, vector<8x256xf32>
    tpu.vector_store %arg8[%c64_50, %c0_51], %111 {strides = array<i32>} : memref<72x256xf32, #tpu.memory_space<vmem>>, vector<8x256xf32>,
    %c0_52 = arith.constant 0 : index
    %c0_53 = arith.constant 0 : index
    %113 = vector.load %arg8[%c0_52, %c0_53] : memref<72x256xf32, #tpu.memory_space<vmem>>, vector<72x256xf32>
    %cst_54 = arith.constant dense<0.000000e+00> : vector<8x256xf32>
    %114 = tpu.matmul %4, %113, %cst_54 {dimension_numbers = #tpu.dot_dimension_numbers<[1], [0], [0], [1], [0, 0, 1, 1], [], []>} : vector<8x72xf32>, vector<72x256xf32>, vector<8x256xf32> -> vector<8x256xf32>
    %115 = vector.broadcast %5 : vector<8x1xf32> to vector<8x256xf32>
    %116 = arith.addf %114, %115 : vector<8x256xf32>
    %cst_55 = arith.constant dense<0.000000e+00> : vector<8xf32>
    %117 = vector.multi_reduction <add>, %116, %cst_55 [1] : vector<8x256xf32> to vector<8xf32>
    %118 = vector.shape_cast %117 : vector<8xf32> to vector<8x1xf32>
    %cst_56 = arith.constant 3.906250e-03 : f32
    %119 = vector.broadcast %cst_56 : f32 to vector<8x1xf32>
    %120 = arith.mulf %118, %119 : vector<8x1xf32>
    %121 = vector.broadcast %120 : vector<8x1xf32> to vector<8x256xf32>
    %122 = arith.subf %116, %121 : vector<8x256xf32>
    %123 = arith.mulf %122, %122 : vector<8x256xf32>
    %cst_57 = arith.constant dense<0.000000e+00> : vector<8xf32>
    %124 = vector.multi_reduction <add>, %123, %cst_57 [1] : vector<8x256xf32> to vector<8xf32>
    %125 = vector.shape_cast %124 : vector<8xf32> to vector<8x1xf32>
    %cst_58 = arith.constant 3.906250e-03 : f32
    %126 = vector.broadcast %cst_58 : f32 to vector<8x1xf32>
    %127 = arith.mulf %125, %126 : vector<8x1xf32>
    %cst_59 = arith.constant 9.99999974E-6 : f32
    %128 = vector.broadcast %cst_59 : f32 to vector<8x1xf32>
    %129 = arith.addf %127, %128 : vector<8x1xf32>
    %130 = math.rsqrt %129 : vector<8x1xf32>
    %131 = vector.broadcast %130 : vector<8x1xf32> to vector<8x256xf32>
    %132 = arith.mulf %122, %131 : vector<8x256xf32>
    %133 = arith.addf %132, %0 : vector<8x256xf32>
    %c0_60 = arith.constant 0 : index
    %c0_61 = arith.constant 0 : index
    %134 = vector.load %arg7[%c0_60, %c0_61] : memref<8x256xf32, #tpu.memory_space<vmem>>, vector<8x256xf32>
    tpu.vector_store %arg7[%c0_60, %c0_61], %133 {strides = array<i32>} : memref<8x256xf32, #tpu.memory_space<vmem>>, vector<8x256xf32>,
    return
  }
  func.func @transform_0(%arg0: i32) -> (i32, i32) {
    %c0_i32 = arith.constant 0 : i32
    %c0_i32_0 = arith.constant 0 : i32
    return %arg0, %c0_i32 : i32, i32
  }
  func.func @transform_1(%arg0: i32) -> (i32, i32, i32) {
    %c0_i32 = arith.constant 0 : i32
    %c0_i32_0 = arith.constant 0 : i32
    %c0_i32_1 = arith.constant 0 : i32
    %c0_i32_2 = arith.constant 0 : i32
    return %c0_i32, %c0_i32_0, %c0_i32_1 : i32, i32, i32
  }
  func.func @transform_2(%arg0: i32) -> (i32, i32) {
    %c0_i32 = arith.constant 0 : i32
    %c0_i32_0 = arith.constant 0 : i32
    %c0_i32_1 = arith.constant 0 : i32
    return %c0_i32, %c0_i32_0 : i32, i32
  }
  func.func @transform_3(%arg0: i32) -> (i32, i32) {
    %c0_i32 = arith.constant 0 : i32
    %c0_i32_0 = arith.constant 0 : i32
    %c0_i32_1 = arith.constant 0 : i32
    return %c0_i32, %c0_i32_0 : i32, i32
  }
  func.func @transform_4(%arg0: i32) -> (i32, i32) {
    %c0_i32 = arith.constant 0 : i32
    %c0_i32_0 = arith.constant 0 : i32
    %c0_i32_1 = arith.constant 0 : i32
    return %c0_i32, %c0_i32_0 : i32, i32
  }
  func.func @transform_5(%arg0: i32) -> (i32, i32) {
    %c0_i32 = arith.constant 0 : i32
    %c0_i32_0 = arith.constant 0 : i32
    %c0_i32_1 = arith.constant 0 : i32
    return %c0_i32, %c0_i32_0 : i32, i32
  }
  func.func @transform_6(%arg0: i32) -> (i32, i32) {
    %c0_i32 = arith.constant 0 : i32
    %c0_i32_0 = arith.constant 0 : i32
    return %arg0, %c0_i32 : i32, i32
  }
}

</mosaic_0001>

<llo_original>
// kernel: tpu_custom_call.1
$region0: #{tpu_custom_call.1}
  #allocation0 [shape = 'u32[]', space=smem, size = 0x4, offset = 0x4, fixed_abs, tag = 'smem constant byte address 0x4 - core index']
  #allocation1 [shape = 'u32[72,128]{1,0:T(1,128)}', space=vmem, size = 0x9000, scoped, tag = 'internal scratch']
  #allocation2 [shape = 'f32[72,256]{1,0:T(8,128)}', space=vmem, size = 0x12000, scoped, tag = 'scratch operand']
  %s0 = inlined_call_operand.hbm [shape: f32[8,256], index: 0, kind: input, shape index: {}]
  %s1 = inlined_call_operand.vmem [shape: f32[9,1,256], index: 1, kind: input, shape index: {}]
  %s2 = inlined_call_operand.hbm [shape: f32[8,72], index: 2, kind: input, shape index: {}]
  %s3 = inlined_call_operand.vmem [shape: f32[8,1], index: 3, kind: input, shape index: {}]
  %s4 = inlined_call_operand.hbm [shape: f32[8,72], index: 4, kind: input, shape index: {}]
  %s5 = inlined_call_operand.vmem [shape: f32[8,1], index: 5, kind: input, shape index: {}]
  %s6 = inlined_call_operand.hbm [shape: f32[8,256], index: 6, kind: output, shape index: {}]
  %s7 = sld [smem:[#allocation0]]
  $region46: #{tpu_custom_call.1} parent=0
    _
  %s9 = ssub.s32 1, %s7
  %s10 = scalar_select 0, %s9, %s7
  $region1: #{tpu_custom_call.1} parent=0
    #allocation3 [shape = 'u8[8192]{0}', space=vmem, size = 0x2000, scoped, tag = 'input window, operand 0, single buffered']
    #allocation4 [shape = 's32[1]{0}', space=sflag, size = 0x4, scoped, tag = 'scoped memory for tpu_custom_call.1']
    #allocation5 [shape = 's32[1]{0}', space=sflag, size = 0x4, scoped, tag = 'scoped memory for tpu_custom_call.1']
    #allocation6 [shape = 'u8[4096]{0}', space=vmem, size = 0x1000, scoped, tag = 'input window, operand 2, single buffered']
    #allocation7 [shape = 's32[1]{0}', space=sflag, size = 0x4, scoped, tag = 'scoped memory for tpu_custom_call.1']
    #allocation8 [shape = 'u8[4096]{0}', space=vmem, size = 0x1000, scoped, tag = 'input window, operand 4, single buffered']
    #allocation9 [shape = 'u8[8192]{0}', space=vmem, size = 0x2000, scoped, tag = 'output window, operand 0, single buffered']
    %11 = vsyncpa [#allocation4], 0
    %12 = vsyncpa [#allocation7], 0
    %13 = vsyncpa [#allocation5], 0
    // Predicated region
    $region2: #{tpu_custom_call.1} parent=1 // pred_check
      _
    $region3: #{tpu_custom_call.1} parent=1 // pred_check_branch
      %15 = sbr.rel (0) target = $region5
    $region4: #{tpu_custom_call.1} parent=1 // pred_region
      %17 = vsyncadd [#allocation4], 0
      %s19 = sshll.u32 %s0, 4
      %s20 = int_to_ptr.hbm [resolvable:$true] %s19
      %s21 = sshll.u32 [#allocation3], 4
      %s22 = int_to_ptr.vmem [resolvable:$true] %s21
      %24 = dma.hbm_to_vmem [thread:$0]  %s20, 256, %s22, [#allocation4]
    $region5: #{tpu_custom_call.1} parent=1 // pred_fallthru
      _
    // Predicated region
    $region6: #{tpu_custom_call.1} parent=1 // pred_check
      _
    $region7: #{tpu_custom_call.1} parent=1 // pred_check_branch
      %26 = sbr.rel (0) target = $region9
    $region8: #{tpu_custom_call.1} parent=1 // pred_region
      _
    $region9: #{tpu_custom_call.1} parent=1 // pred_fallthru
      _
    // Predicated region
    $region10: #{tpu_custom_call.1} parent=1 // pred_check
      _
    $region11: #{tpu_custom_call.1} parent=1 // pred_check_branch
      %28 = sbr.rel (0) target = $region13
    $region12: #{tpu_custom_call.1} parent=1 // pred_region
      %30 = vsyncadd [#allocation7], 0
      %s32 = sshll.u32 %s2, 4
      %s33 = int_to_ptr.hbm [resolvable:$true] %s32
      %s34 = sshll.u32 [#allocation6], 4
      %s35 = int_to_ptr.vmem [resolvable:$true] %s34
      %37 = dma.hbm_to_vmem [thread:$0]  %s33, 128, %s35, [#allocation7]
    $region13: #{tpu_custom_call.1} parent=1 // pred_fallthru
      _
    // Predicated region
    $region14: #{tpu_custom_call.1} parent=1 // pred_check
      _
    $region15: #{tpu_custom_call.1} parent=1 // pred_check_branch
      %39 = sbr.rel (0) target = $region17
    $region16: #{tpu_custom_call.1} parent=1 // pred_region
      _
    $region17: #{tpu_custom_call.1} parent=1 // pred_fallthru
      _
    // Predicated region
    $region18: #{tpu_custom_call.1} parent=1 // pred_check
      _
    $region19: #{tpu_custom_call.1} parent=1 // pred_check_branch
      %41 = sbr.rel (0) target = $region21
    $region20: #{tpu_custom_call.1} parent=1 // pred_region
      %43 = vsyncadd [#allocation7], 0
      %s45 = sshll.u32 %s4, 4
      %s46 = int_to_ptr.hbm [resolvable:$true] %s45
      %s47 = sshll.u32 [#allocation8], 4
      %s48 = int_to_ptr.vmem [resolvable:$true] %s47
      %50 = dma.hbm_to_vmem [thread:$0]  %s46, 128, %s48, [#allocation7]
    $region21: #{tpu_custom_call.1} parent=1 // pred_fallthru
      _
    // Predicated region
    $region22: #{tpu_custom_call.1} parent=1 // pred_check
      _
    $region23: #{tpu_custom_call.1} parent=1 // pred_check_branch
      %52 = sbr.rel (0) target = $region25
    $region24: #{tpu_custom_call.1} parent=1 // pred_region
      _
    $region25: #{tpu_custom_call.1} parent=1 // pred_fallthru
      _
    // Predicated region
    $region26: #{tpu_custom_call.1} parent=1 // pred_check
      _
    $region27: #{tpu_custom_call.1} parent=1 // pred_check_branch
      %54 = sbr.rel (0) target = $region29
    $region28: #{tpu_custom_call.1} parent=1 // pred_region
      %56 = dma.done [#allocation4], 256
    $region29: #{tpu_custom_call.1} parent=1 // pred_fallthru
      _
    // Predicated region
    $region30: #{tpu_custom_call.1} parent=1 // pred_check
      _
    $region31: #{tpu_custom_call.1} parent=1 // pred_check_branch
      %58 = sbr.rel (0) target = $region33
    $region32: #{tpu_custom_call.1} parent=1 // pred_region
      %60 = dma.done [#allocation7], 128
    $region33: #{tpu_custom_call.1} parent=1 // pred_fallthru
      _
    // Predicated region
    $region34: #{tpu_custom_call.1} parent=1 // pred_check
      _
    $region35: #{tpu_custom_call.1} parent=1 // pred_check_branch
      %62 = sbr.rel (0) target = $region37
    $region36: #{tpu_custom_call.1} parent=1 // pred_region
      %64 = dma.done [#allocation7], 128
    $region37: #{tpu_custom_call.1} parent=1 // pred_fallthru
      _
    %v65 = vld [vmem:[#allocation3] sm:$0xff]
    %v66 = vld [vmem:[#allocation3 + $0x8] sm:$0xff]
    %v67 = vld [vmem:[%s1] sm:$0x3]
    %v68 = vld [vmem:[%s1 + $0x2] sm:$0x3]
    %v69 = vld [vmem:[%s1 + $0x4] sm:$0x3]
    %v70 = vld [vmem:[%s1 + $0x6] sm:$0x3]
    %v71 = vld [vmem:[%s1 + $0xa] sm:$0x3]
    %v72 = vld [vmem:[%s1 + $0xc] sm:$0x3]
    %v73 = vld [vmem:[%s1 + $0xe] sm:$0x3]
    %v74 = vld [vmem:[%s1 + $0x10] sm:$0x3]
    %v75 = vld [vmem:[#allocation6] sm:$0xff]
    %v76 = vld [vmem:[%s3] sm:$0xff]
    %v77 = vld [vmem:[#allocation8] sm:$0xff]
    %v78 = vld [vmem:[%s5] sm:$0xff]
    %79 = vrot.lane.b32.xlu0 %v65, 17
    %v80 = vpop.permute.xlu0 %79
    %81 = vrot.lane.b32.xlu0 %v66, 17
    %v82 = vpop.permute.xlu0 %81
    %v83 = vlaneseq
    %v84 = vand.u32 %v83, 127
    %vm85 = vcmp.lt.s32.totalorder %v84, 17
    %v86 = vsel %vm85, %v80, %v82
    %v87 = vsel %vm85, %v82, %v80
    %v89 = vperm.slane %v67, 0
    %v90 = vperm.slane %v67, 1
    %v93 = vmul.f32 %v87, %v89
    %v94 = vmul.f32 %v86, %v90
    %95 = vst [vmem:[#allocation2] sm:$0xff] %v93
    %96 = vst [vmem:[#allocation2 + $0x8] sm:$0xff] %v94
    %97 = vrot.lane.b32.xlu0 %v65, 16
    %v98 = vpop.permute.xlu0 %97
    %99 = vrot.lane.b32.xlu0 %v66, 16
    %v100 = vpop.permute.xlu0 %99
    %vm101 = vcmp.lt.s32.totalorder %v84, 16
    %v102 = vsel %vm101, %v98, %v100
    %v103 = vsel %vm101, %v100, %v98
    %v105 = vperm.slane %v68, 0
    %v106 = vperm.slane %v68, 1
    %v109 = vmul.f32 %v103, %v105
    %v110 = vmul.f32 %v102, %v106
    %111 = vst [vmem:[#allocation2 + $0x10] sm:$0xff] %v109
    %112 = vst [vmem:[#allocation2 + $0x18] sm:$0xff] %v110
    %113 = vrot.lane.b32.xlu0 %v65, 15
    %v114 = vpop.permute.xlu0 %113
    %115 = vrot.lane.b32.xlu0 %v66, 15
    %v116 = vpop.permute.xlu0 %115
    %vm117 = vcmp.lt.s32.totalorder %v84, 15
    %v118 = vsel %vm117, %v114, %v116
    %v119 = vsel %vm117, %v116, %v114
    %v121 = vperm.slane %v69, 0
    %v122 = vperm.slane %v69, 1
    %v125 = vmul.f32 %v119, %v121
    %v126 = vmul.f32 %v118, %v122
    %127 = vst [vmem:[#allocation2 + $0x20] sm:$0xff] %v125
    %128 = vst [vmem:[#allocation2 + $0x28] sm:$0xff] %v126
    %129 = vrot.lane.b32.xlu0 %v65, 1
    %v130 = vpop.permute.xlu0 %129
    %131 = vrot.lane.b32.xlu0 %v66, 1
    %v132 = vpop.permute.xlu0 %131
    %vm133 = vcmp.lt.s32.totalorder %v84, 1
    %v134 = vsel %vm133, %v130, %v132
    %v135 = vsel %vm133, %v132, %v130
    %v137 = vperm.slane %v70, 0
    %v138 = vperm.slane %v70, 1
    %v141 = vmul.f32 %v135, %v137
    %v142 = vmul.f32 %v134, %v138
    %143 = vst [vmem:[#allocation2 + $0x30] sm:$0xff] %v141
    %144 = vst [vmem:[#allocation2 + $0x38] sm:$0xff] %v142
    %145 = vst [vmem:[#allocation2 + $0x40] sm:$0xff] %v65
    %146 = vst [vmem:[#allocation2 + $0x48] sm:$0xff] %v66
    %147 = vrot.lane.b32.xlu0 %v65, 127
    %v148 = vpop.permute.xlu0 %147
    %149 = vrot.lane.b32.xlu0 %v66, 127
    %v150 = vpop.permute.xlu0 %149
    %vm151 = vcmp.lt.s32.totalorder %v84, 127
    %v152 = vsel %vm151, %v148, %v150
    %v153 = vsel %vm151, %v150, %v148
    %v155 = vperm.slane %v71, 0
    %v156 = vperm.slane %v71, 1
    %v159 = vmul.f32 %v152, %v155
    %v160 = vmul.f32 %v153, %v156
    %161 = vst [vmem:[#allocation2 + $0x50] sm:$0xff] %v159
    %162 = vst [vmem:[#allocation2 + $0x58] sm:$0xff] %v160
    %163 = vrot.lane.b32.xlu0 %v65, 113
    %v164 = vpop.permute.xlu0 %163
    %165 = vrot.lane.b32.xlu0 %v66, 113
    %v166 = vpop.permute.xlu0 %165
    %vm167 = vcmp.lt.s32.totalorder %v84, 113
    %v168 = vsel %vm167, %v164, %v166
    %v169 = vsel %vm167, %v166, %v164
    %v171 = vperm.slane %v72, 0
    %v172 = vperm.slane %v72, 1
    %v175 = vmul.f32 %v168, %v171
    %v176 = vmul.f32 %v169, %v172
    %177 = vst [vmem:[#allocation2 + $0x60] sm:$0xff] %v175
    %178 = vst [vmem:[#allocation2 + $0x68] sm:$0xff] %v176
    %179 = vrot.lane.b32.xlu0 %v65, 112
    %v180 = vpop.permute.xlu0 %179
    %181 = vrot.lane.b32.xlu0 %v66, 112
    %v182 = vpop.permute.xlu0 %181
    %vm183 = vcmp.lt.s32.totalorder %v84, 112
    %v184 = vsel %vm183, %v180, %v182
    %v185 = vsel %vm183, %v182, %v180
    %v187 = vperm.slane %v73, 0
    %v188 = vperm.slane %v73, 1
    %v191 = vmul.f32 %v184, %v187
    %v192 = vmul.f32 %v185, %v188
    %193 = vst [vmem:[#allocation2 + $0x70] sm:$0xff] %v191
    %194 = vst [vmem:[#allocation2 + $0x78] sm:$0xff] %v192
    %195 = vrot.lane.b32.xlu0 %v65, 111
    %v196 = vpop.permute.xlu0 %195
    %197 = vrot.lane.b32.xlu0 %v66, 111
    %v198 = vpop.permute.xlu0 %197
    %vm199 = vcmp.lt.s32.totalorder %v84, 111
    %v200 = vsel %vm199, %v196, %v198
    %v201 = vsel %vm199, %v198, %v196
    %v203 = vperm.slane %v74, 0
    %v204 = vperm.slane %v74, 1
    %v207 = vmul.f32 %v200, %v203
    %v208 = vmul.f32 %v201, %v204
    %209 = vst [vmem:[#allocation2 + $0x80] sm:$0xff] %v207
    %210 = vst [vmem:[#allocation2 + $0x88] sm:$0xff] %v208
    %v211 = vld [vmem:[#allocation2] sm:$0xff]
    %v212 = vld [vmem:[#allocation2 + $0x8] sm:$0xff]
    %v213 = vld [vmem:[#allocation2 + $0x10] sm:$0xff]
    %v214 = vld [vmem:[#allocation2 + $0x18] sm:$0xff]
    %v215 = vld [vmem:[#allocation2 + $0x20] sm:$0xff]
    %v216 = vld [vmem:[#allocation2 + $0x28] sm:$0xff]
    %v217 = vld [vmem:[#allocation2 + $0x30] sm:$0xff]
    %v218 = vld [vmem:[#allocation2 + $0x38] sm:$0xff]
    %v219 = vld [vmem:[#allocation2 + $0x40] sm:$0xff]
    %v220 = vld [vmem:[#allocation2 + $0x48] sm:$0xff]
    %v221 = vld [vmem:[#allocation2 + $0x50] sm:$0xff]
    %v222 = vld [vmem:[#allocation2 + $0x58] sm:$0xff]
    %v223 = vld [vmem:[#allocation2 + $0x60] sm:$0xff]
    %v224 = vld [vmem:[#allocation2 + $0x68] sm:$0xff]
    %v225 = vld [vmem:[#allocation2 + $0x70] sm:$0xff]
    %v226 = vld [vmem:[#allocation2 + $0x78] sm:$0xff]
    %v227 = vld [vmem:[#allocation2 + $0x80] sm:$0xff]
    %v228 = vld [vmem:[#allocation2 + $0x88] sm:$0xff]
    %230 = vset.pattern.permute.xlu0 0
    %231 = vperm.xlu0 %230, %v76
    %v232 = vpop.permute.xlu0 %231
    %vm234 = vcmask 588800
    %v236 = vsel %vm234, %v75, 0
    %238 = vmatpush.msra.mxu0 0.0
    %239 = vmatpush.msra.mxu0 0.0
    %240 = vmatpush.msra.mxu0 0.0
    %241 = vmatpush.msra.mxu0 0.0
    %242 = vmatpush.msra.mxu0 0.0
    %243 = vmatpush.msra.mxu0 0.0
    %244 = vmatpush.msra.mxu0 0.0
    %245 = vmatpush.msra.mxu0 %v227
    %246 = vmatpush.msra.mxu0 %v225
    %247 = vmatpush.msra.mxu0 %v223
    %248 = vmatpush.msra.mxu0 %v221
    %249 = vmatpush.msra.mxu0 %v219
    %250 = vmatpush.msra.mxu0 %v217
    %251 = vmatpush.msra.mxu0 %v215
    %252 = vmatpush.msra.mxu0 %v213
    %253 = vmatpush.msra.mxu0 %v211
    %254 = vmatmul.f32.gmra.mxu0 %v236
    %v255 = vpop.f32.mrf.mxu0
    %v256 = vadd.f32 %v232, %v255
    %257 = vdwg.mxu0
    %258 = vmatpush.msra.mxu0 0.0
    %259 = vmatpush.msra.mxu0 0.0
    %260 = vmatpush.msra.mxu0 0.0
    %261 = vmatpush.msra.mxu0 0.0
    %262 = vmatpush.msra.mxu0 0.0
    %263 = vmatpush.msra.mxu0 0.0
    %264 = vmatpush.msra.mxu0 0.0
    %265 = vmatpush.msra.mxu0 %v228
    %266 = vmatpush.msra.mxu0 %v226
    %267 = vmatpush.msra.mxu0 %v224
    %268 = vmatpush.msra.mxu0 %v222
    %269 = vmatpush.msra.mxu0 %v220
    %270 = vmatpush.msra.mxu0 %v218
    %271 = vmatpush.msra.mxu0 %v216
    %272 = vmatpush.msra.mxu0 %v214
    %273 = vmatpush.msra.mxu0 %v212
    %274 = vmatmul.f32.gmra.mxu0 %v236
    %v275 = vpop.f32.mrf.mxu0
    %v276 = vadd.f32 %v232, %v275
    %277 = vdwg.mxu0
    %vm278 = vcmp.ge.f32.partialorder %v256, 0.0
    %vm279 = vcmp.ge.f32.partialorder %v276, 0.0
    %v280 = vmul.f32 %v256, 0.01
    %v281 = vmul.f32 %v276, 0.01
    %v282 = vsel %vm278, %v256, %v280
    %v283 = vsel %vm279, %v276, %v281
    %284 = vrot.lane.b32.xlu0 %v282, 17
    %v285 = vpop.permute.xlu0 %284
    %286 = vrot.lane.b32.xlu0 %v283, 17
    %v287 = vpop.permute.xlu0 %286
    %v288 = vsel %vm85, %v285, %v287
    %v289 = vsel %vm85, %v287, %v285
    %v290 = vmul.f32 %v289, %v89
    %v291 = vmul.f32 %v288, %v90
    %292 = vst [vmem:[#allocation2] sm:$0xff] %v290
    %293 = vst [vmem:[#allocation2 + $0x8] sm:$0xff] %v291
    %294 = vrot.lane.b32.xlu0 %v282, 16
    %v295 = vpop.permute.xlu0 %294
    %296 = vrot.lane.b32.xlu0 %v283, 16
    %v297 = vpop.permute.xlu0 %296
    %v298 = vsel %vm101, %v295, %v297
    %v299 = vsel %vm101, %v297, %v295
    %v300 = vmul.f32 %v299, %v105
    %v301 = vmul.f32 %v298, %v106
    %302 = vst [vmem:[#allocation2 + $0x10] sm:$0xff] %v300
    %303 = vst [vmem:[#allocation2 + $0x18] sm:$0xff] %v301
    %304 = vrot.lane.b32.xlu0 %v282, 15
    %v305 = vpop.permute.xlu0 %304
    %306 = vrot.lane.b32.xlu0 %v283, 15
    %v307 = vpop.permute.xlu0 %306
    %v308 = vsel %vm117, %v305, %v307
    %v309 = vsel %vm117, %v307, %v305
    %v310 = vmul.f32 %v309, %v121
    %v311 = vmul.f32 %v308, %v122
    %312 = vst [vmem:[#allocation2 + $0x20] sm:$0xff] %v310
    %313 = vst [vmem:[#allocation2 + $0x28] sm:$0xff] %v311
    %314 = vrot.lane.b32.xlu0 %v282, 1
    %v315 = vpop.permute.xlu0 %314
    %316 = vrot.lane.b32.xlu0 %v283, 1
    %v317 = vpop.permute.xlu0 %316
    %v318 = vsel %vm133, %v315, %v317
    %v319 = vsel %vm133, %v317, %v315
    %v320 = vmul.f32 %v319, %v137
    %v321 = vmul.f32 %v318, %v138
    %322 = vst [vmem:[#allocation2 + $0x30] sm:$0xff] %v320
    %323 = vst [vmem:[#allocation2 + $0x38] sm:$0xff] %v321
    %324 = vst [vmem:[#allocation2 + $0x40] sm:$0xff] %v282
    %325 = vst [vmem:[#allocation2 + $0x48] sm:$0xff] %v283
    %326 = vrot.lane.b32.xlu0 %v282, 127
    %v327 = vpop.permute.xlu0 %326
    %328 = vrot.lane.b32.xlu0 %v283, 127
    %v329 = vpop.permute.xlu0 %328
    %v330 = vsel %vm151, %v327, %v329
    %v331 = vsel %vm151, %v329, %v327
    %v332 = vmul.f32 %v330, %v155
    %v333 = vmul.f32 %v331, %v156
    %334 = vst [vmem:[#allocation2 + $0x50] sm:$0xff] %v332
    %335 = vst [vmem:[#allocation2 + $0x58] sm:$0xff] %v333
    %336 = vrot.lane.b32.xlu0 %v282, 113
    %v337 = vpop.permute.xlu0 %336
    %338 = vrot.lane.b32.xlu0 %v283, 113
    %v339 = vpop.permute.xlu0 %338
    %v340 = vsel %vm167, %v337, %v339
    %v341 = vsel %vm167, %v339, %v337
    %v342 = vmul.f32 %v340, %v171
    %v343 = vmul.f32 %v341, %v172
    %344 = vst [vmem:[#allocation2 + $0x60] sm:$0xff] %v342
    %345 = vst [vmem:[#allocation2 + $0x68] sm:$0xff] %v343
    %346 = vrot.lane.b32.xlu0 %v282, 112
    %v347 = vpop.permute.xlu0 %346
    %348 = vrot.lane.b32.xlu0 %v283, 112
    %v349 = vpop.permute.xlu0 %348
    %v350 = vsel %vm183, %v347, %v349
    %v351 = vsel %vm183, %v349, %v347
    %v352 = vmul.f32 %v350, %v187
    %v353 = vmul.f32 %v351, %v188
    %354 = vst [vmem:[#allocation2 + $0x70] sm:$0xff] %v352
    %355 = vst [vmem:[#allocation2 + $0x78] sm:$0xff] %v353
    %356 = vrot.lane.b32.xlu0 %v282, 111
    %v357 = vpop.permute.xlu0 %356
    %358 = vrot.lane.b32.xlu0 %v283, 111
    %v359 = vpop.permute.xlu0 %358
    %v360 = vsel %vm199, %v357, %v359
    %v361 = vsel %vm199, %v359, %v357
    %v362 = vmul.f32 %v360, %v203
    %v363 = vmul.f32 %v361, %v204
    %364 = vst [vmem:[#allocation2 + $0x80] sm:$0xff] %v362
    %365 = vst [vmem:[#allocation2 + $0x88] sm:$0xff] %v363
    %v366 = vld [vmem:[#allocation2] sm:$0xff]
    %v367 = vld [vmem:[#allocation2 + $0x8] sm:$0xff]
    %v368 = vld [vmem:[#allocation2 + $0x10] sm:$0xff]
    %v369 = vld [vmem:[#allocation2 + $0x18] sm:$0xff]
    %v370 = vld [vmem:[#allocation2 + $0x20] sm:$0xff]
    %v371 = vld [vmem:[#allocation2 + $0x28] sm:$0xff]
    %v372 = vld [vmem:[#allocation2 + $0x30] sm:$0xff]
    %v373 = vld [vmem:[#allocation2 + $0x38] sm:$0xff]
    %v374 = vld [vmem:[#allocation2 + $0x40] sm:$0xff]
    %v375 = vld [vmem:[#allocation2 + $0x48] sm:$0xff]
    %v376 = vld [vmem:[#allocation2 + $0x50] sm:$0xff]
    %v377 = vld [vmem:[#allocation2 + $0x58] sm:$0xff]
    %v378 = vld [vmem:[#allocation2 + $0x60] sm:$0xff]
    %v379 = vld [vmem:[#allocation2 + $0x68] sm:$0xff]
    %v380 = vld [vmem:[#allocation2 + $0x70] sm:$0xff]
    %v381 = vld [vmem:[#allocation2 + $0x78] sm:$0xff]
    %v382 = vld [vmem:[#allocation2 + $0x80] sm:$0xff]
    %v383 = vld [vmem:[#allocation2 + $0x88] sm:$0xff]
    %385 = vset.pattern.permute.xlu0 0
    %386 = vperm.xlu0 %385, %v78
    %v387 = vpop.permute.xlu0 %386
    %v390 = vsel %vm234, %v77, 0
    %392 = vmatpush.msra.mxu0 0.0
    %393 = vmatpush.msra.mxu0 0.0
    %394 = vmatpush.msra.mxu0 0.0
    %395 = vmatpush.msra.mxu0 0.0
    %396 = vmatpush.msra.mxu0 0.0
    %397 = vmatpush.msra.mxu0 0.0
    %398 = vmatpush.msra.mxu0 0.0
    %399 = vmatpush.msra.mxu0 %v382
    %400 = vmatpush.msra.mxu0 %v380
    %401 = vmatpush.msra.mxu0 %v378
    %402 = vmatpush.msra.mxu0 %v376
    %403 = vmatpush.msra.mxu0 %v374
    %404 = vmatpush.msra.mxu0 %v372
    %405 = vmatpush.msra.mxu0 %v370
    %406 = vmatpush.msra.mxu0 %v368
    %407 = vmatpush.msra.mxu0 %v366
    %408 = vmatmul.f32.gmra.mxu0 %v390
    %v409 = vpop.f32.mrf.mxu0
    %v410 = vadd.f32 %v387, %v409
    %411 = vdwg.mxu0
    %412 = vmatpush.msra.mxu0 0.0
    %413 = vmatpush.msra.mxu0 0.0
    %414 = vmatpush.msra.mxu0 0.0
    %415 = vmatpush.msra.mxu0 0.0
    %416 = vmatpush.msra.mxu0 0.0
    %417 = vmatpush.msra.mxu0 0.0
    %418 = vmatpush.msra.mxu0 0.0
    %419 = vmatpush.msra.mxu0 %v383
    %420 = vmatpush.msra.mxu0 %v381
    %421 = vmatpush.msra.mxu0 %v379
    %422 = vmatpush.msra.mxu0 %v377
    %423 = vmatpush.msra.mxu0 %v375
    %424 = vmatpush.msra.mxu0 %v373
    %425 = vmatpush.msra.mxu0 %v371
    %426 = vmatpush.msra.mxu0 %v369
    %427 = vmatpush.msra.mxu0 %v367
    %428 = vmatmul.f32.gmra.mxu0 %v390
    %v429 = vpop.f32.mrf.mxu0
    %v430 = vadd.f32 %v387, %v429
    %431 = vdwg.mxu0
    %v432 = vadd.f32 %v410, %v430
    %433 = vadd.xlane.f32.xlu0 %v432
    %v434 = vpop.xlane.xlu0 %433
    %v435 = vmul.f32 %v434, 0.00390625
    %v436 = vsub.f32 %v410, %v435
    %v437 = vsub.f32 %v430, %v435
    %v438 = vmul.f32 %v436, %v436
    %v439 = vmul.f32 %v437, %v437
    %v440 = vadd.f32 %v438, %v439
    %441 = vadd.xlane.f32.xlu0 %v440
    %v442 = vpop.xlane.xlu0 %441
    %v443 = vmul.f32 %v442, 0.00390625
    %v444 = vadd.f32 %v443, 1e-05
    %v445 = vrsqrt.pop %v444
    %v446 = vmul.f32 %v445, %v444
    %v447 = vmul.f32 %v446, %v445
    %v448 = vmul.f32 0.5, %v447
    %v449 = vsub.f32 1.5, %v448
    %v450 = vmul.f32 %v445, %v449
    %vm451 = vweird.f32 %v444
    %vm452 = vweird.f32 %v445
    %vm453 = vmor %vm451, %vm452
    %v454 = vsel %vm453, %v445, %v450
    %v455 = vmul.f32 %v436, %v454
    %v456 = vmul.f32 %v437, %v454
    %v457 = vadd.f32 %v455, %v65
    %v458 = vadd.f32 %v456, %v66
    %459 = vst [vmem:[#allocation9] sm:$0xff] %v457
    %460 = vst [vmem:[#allocation9 + $0x8] sm:$0xff] %v458
    // Predicated region
    $region38: #{tpu_custom_call.1} parent=1 // pred_check
      _
    $region39: #{tpu_custom_call.1} parent=1 // pred_check_branch
      %462 = sbr.rel (0) target = $region41
    $region40: #{tpu_custom_call.1} parent=1 // pred_region
      %464 = vsyncadd [#allocation5], 0
      %s466 = sshll.u32 [#allocation9], 4
      %s467 = int_to_ptr.vmem [resolvable:$true] %s466
      %s468 = sshll.u32 %s6, 4
      %s469 = int_to_ptr.hbm [resolvable:$true] %s468
      %471 = dma.vmem_to_hbm [thread:$0]  %s467, 256, %s469, [#allocation5]
    $region41: #{tpu_custom_call.1} parent=1 // pred_fallthru
      _
    // Predicated region
    $region42: #{tpu_custom_call.1} parent=1 // pred_check
      _
    $region43: #{tpu_custom_call.1} parent=1 // pred_check_branch
      %473 = sbr.rel (0) target = $region45
    $region44: #{tpu_custom_call.1} parent=1 // pred_region
      %475 = dma.done [#allocation5], 256
    $region45: #{tpu_custom_call.1} parent=1 // pred_fallthru
      _
    %476 = vsyncpa [#allocation4], 1
    %477 = vsyncpa [#allocation7], 1
    %478 = vsyncpa [#allocation5], 1

</llo_original>
